<compile_context>
chip_gen: v6e
topology: v6e:2x2x1
jax: 0.10.0
libtpu: 0.0.40
codegen_flags: <defaults>
</compile_context>

<pallas_src>
import functools

import jax
import jax.numpy as jnp
from jax.experimental import pallas as pl
from jax.experimental.pallas import tpu as pltpu

_MIB = 1024 * 1024


def _tpu_vmem_info():
    """Returns (physical VMEM bytes per core, likely multi-TensorCore chip)."""
    vmem = 64 * _MIB                      # conservative fallback (v7x per-TC)
    try:
        vmem = int(pltpu.get_tpu_info().vmem_capacity_bytes)
    except Exception:
        pass
    # v7x pairs two TensorCores per chip, each with 64 MiB VMEM; older
    # generations (v5e/v6e) have a single core with 128 MiB.
    multi_core = vmem <= 64 * _MIB
    return vmem, multi_core


# ----------------------------- kernels --------------------------------------


def _arm_fused_kernel(x_ref, w_ref, b_ref, o_ref):
    """Single pass: pool -> 1x1 conv -> sigmoid -> re-weight; one batch/step."""
    x = x_ref[0]                                               # (C, HW), input dtype
    # Spatial mean with f32 accumulation (lane reduction -> (C, 1) column).
    mean = jnp.sum(x, axis=-1, keepdims=True,
                   dtype=jnp.float32) * (1.0 / x.shape[-1])
    # 1x1 conv on the pooled vector: (C_out, C_in) @ (C_in, 1) + bias.
    # NOTE: default matmul precision (bf16 passes); pass precision=HIGHEST in
    # jnp.dot if exact f32 parity with PyTorch is required.
    logits = jnp.dot(w_ref[...], mean,
                     preferred_element_type=jnp.float32) + b_ref[...]
    gate = jax.nn.sigmoid(logits)                              # (C, 1) f32
    # Re-weight in the input dtype; gate broadcasts over the HW lanes.
    o_ref[0] = x * gate.astype(x.dtype)


def _arm_pool_kernel(x_ref, sum_ref, *, hw, tile):
    """Pass 1: stream HW tiles, accumulate per-channel f32 sums.

    The output block index is constant along the (last, 'arbitrary') tile
    axis, so the (1, C, 1) sum block stays resident in VMEM across the whole
    batch and is written back once (standard accumulator pattern).
    """
    t = pl.program_id(1)

    @pl.when(t == 0)
    def _init():
        sum_ref[...] = jnp.zeros_like(sum_ref)

    x = x_ref[0]                                               # (C, tile)
    if hw % tile:
        # cdiv grid: the last tile is ragged and Pallas may fill the
        # out-of-bounds input lanes with garbage -- mask them out of the sum.
        lane = jax.lax.broadcasted_iota(jnp.int32, x.shape, 1)
        x = jnp.where(t * tile + lane < hw, x, jnp.zeros_like(x))
    sum_ref[0] += jnp.sum(x, axis=-1, keepdims=True, dtype=jnp.float32)


def _arm_apply_kernel(x_ref, gate_ref, o_ref):
    """Pass 2: broadcast-multiply each HW tile by its (batch, channel) gate.

    On the ragged last tile Pallas masks the out-of-bounds output lanes on
    store, so garbage input lanes are harmless.
    """
    o_ref[0] = x_ref[0] * gate_ref[0].astype(x_ref.dtype)


# ----------------------------- wrapper --------------------------------------


def arm_forward(x_nchw, w_conv, b_conv, *, max_hw_tile=4096,
                force_streamed=False):
    """x_nchw: (N, C, H, W); w_conv: (C_out, C_in, 1, 1); b_conv: (C_out,)."""
    N, C, H, W = x_nchw.shape
    HW = H * W

    x = x_nchw.reshape(N, C, HW)              # free dim-collapse, no transpose
    w = w_conv.reshape(C, C)                  # (C_out, C_in)
    b = b_conv.reshape(C, 1).astype(jnp.float32)

    vmem_cap, multi_core = _tpu_vmem_info()
    vmem_limit = int(max(vmem_cap - 8 * _MIB, 32 * _MIB))
    # Fused path holds 2x slab (input, double-buffered) + 2x slab (output)
    # plus the 64 KiB weight and internal scratch: keep the slab <= ~1/5 of
    # the VMEM limit.  -> ~23 MiB on v5e/v6e, ~11 MiB on v7x.
    fused_slab_cap = min((vmem_limit - 2 * _MIB) // 5, 24 * _MIB)

    slab_bytes = C * HW * jnp.dtype(x.dtype).itemsize
    tile_cap = max(128, (int(max_hw_tile) // 128) * 128)       # lane-dense

    # Single-image inference on a 2-TensorCore chip (v7x): grid=(N,) would
    # leave one core idle, so route big single-batch maps to the streamed
    # path whose HW-tile axis is marked 'parallel'.
    prefer_streamed_split = multi_core and N == 1 and HW >= 2 * tile_cap

    use_fused = (not force_streamed
                 and slab_bytes <= fused_slab_cap
                 and not prefer_streamed_split)

    if use_fused:
        # Fused single-pass path: one read + one write of x.
        out = pl.pallas_call(
            _arm_fused_kernel,
            out_shape=jax.ShapeDtypeStruct((N, C, HW), x.dtype),
            grid_spec=pltpu.PrefetchScalarGridSpec(
                num_scalar_prefetch=0,
                grid=(N,),
                in_specs=[
                    pl.BlockSpec((1, C, HW), lambda n: (n, 0, 0)),
                    pl.BlockSpec((C, C), lambda n: (0, 0)),
                    pl.BlockSpec((C, 1), lambda n: (0, 0)),
                ],
                out_specs=pl.BlockSpec((1, C, HW), lambda n: (n, 0, 0)),
            ),
            compiler_params=pltpu.CompilerParams(
                dimension_semantics=("parallel",),     # shards batches on v7x
                vmem_limit_bytes=vmem_limit),
        )(x, w, b)
        return out.reshape(N, C, H, W)

    # ---- Streamed two-pass path (large maps / forced / N==1 on v7x) -------
    if HW <= tile_cap:
        tile, num_tiles = HW, 1                # single full-extent lane block
    else:
        tile = tile_cap                        # multiple of 128, lane-dense
        num_tiles = pl.cdiv(HW, tile)          # ragged tail masked in-kernel

    # Pass 1: per-(batch, channel) spatial sums (f32).
    sums = pl.pallas_call(
        functools.partial(_arm_pool_kernel, hw=HW, tile=tile),
        out_shape=jax.ShapeDtypeStruct((N, C, 1), jnp.float32),
        grid_spec=pltpu.PrefetchScalarGridSpec(
            num_scalar_prefetch=0,
            grid=(N, num_tiles),
            in_specs=[pl.BlockSpec((1, C, tile), lambda n, t: (n, 0, t))],
            out_specs=pl.BlockSpec((1, C, 1), lambda n, t: (n, 0, 0)),
        ),
        compiler_params=pltpu.CompilerParams(
            dimension_semantics=("parallel", "arbitrary"),
            vmem_limit_bytes=vmem_limit),
    )(x)

    # Tiny (C,C)@(C,N) gate once in the wrapper: keeps the streaming kernels
    # pure DMA + elementwise and the weight out of the hot loop.
    means = sums[:, :, 0] * (1.0 / HW)                          # (N, C) f32
    logits = jnp.einsum("nc,dc->nd", means,
                        w.astype(jnp.float32)) + b[:, 0][None, :]
    gate = jax.nn.sigmoid(logits)[:, :, None]                   # (N, C, 1) f32

    # Pass 2: broadcast-multiply each HW tile by its gate.
    out = pl.pallas_call(
        _arm_apply_kernel,
        out_shape=jax.ShapeDtypeStruct((N, C, HW), x.dtype),
        grid_spec=pltpu.PrefetchScalarGridSpec(
            num_scalar_prefetch=0,
            grid=(N, num_tiles),
            in_specs=[
                pl.BlockSpec((1, C, tile), lambda n, t: (n, 0, t)),
                pl.BlockSpec((1, C, 1), lambda n, t: (n, 0, 0)),
            ],
            out_specs=pl.BlockSpec((1, C, tile), lambda n, t: (n, 0, t)),
        ),
        compiler_params=pltpu.CompilerParams(
            dimension_semantics=("parallel", "parallel"),
            vmem_limit_bytes=vmem_limit),
    )(x, gate)

    return out.reshape(N, C, H, W)


def reference_forward(x_nchw, w_conv, b_conv):
    """Pure-JAX reference matching the PyTorch module semantics."""
    N, C, H, W = x_nchw.shape
    pooled = jnp.mean(x_nchw, axis=(2, 3), keepdims=True)           # (N, C, 1, 1)
    w = w_conv.reshape(C, C)                                        # (C_out, C_in)
    conv = jnp.einsum("ncij,dc->ndij", pooled, w) + b_conv.reshape(1, C, 1, 1)
    gate = jax.nn.sigmoid(conv)
    return gate * x_nchw


if __name__ == "__main__":
    key = jax.random.PRNGKey(0)
    k_x, k_w, k_b, k_x2, k_x3 = jax.random.split(key, 5)

    # Module fixes channels at 128 (nn.Conv2d(128, 128, 1)).
    N, C, H, W = 2, 128, 8, 8
    x = jax.random.normal(k_x, (N, C, H, W), dtype=jnp.float32)

    fan_in = C
    bound = 1.0 / (fan_in ** 0.5)
    w_conv = jax.random.uniform(k_w, (C, C, 1, 1), jnp.float32, -bound, bound)
    b_conv = jax.random.uniform(k_b, (C,), jnp.float32, -bound, bound)

    # Fused single-pass path (small feature map).
    y = arm_forward(x, w_conv, b_conv)
    jax.block_until_ready(y)
    y_ref = reference_forward(x, w_conv, b_conv)
    assert y.shape == (N, C, H, W)
    assert jnp.allclose(y, y_ref, atol=1e-5, rtol=1e-5), "fused path mismatch"

    # Streamed two-pass path, evenly divided HW tiles (forced, tiny tiles).
    x2 = jax.random.normal(k_x2, (N, C, 16, 16), dtype=jnp.float32)
    y2 = arm_forward(x2, w_conv, b_conv, force_streamed=True, max_hw_tile=128)
    jax.block_until_ready(y2)
    assert jnp.allclose(y2, reference_forward(x2, w_conv, b_conv),
                        atol=1e-5, rtol=1e-5), "streamed (even) mismatch"

    # Streamed path with a ragged last HW tile (exercises in-kernel masking,
    # no XLA-side pad / slice).
    x3 = jax.random.normal(k_x3, (N, C, 13, 13), dtype=jnp.float32)
    y3 = arm_forward(x3, w_conv, b_conv, force_streamed=True, max_hw_tile=128)
    jax.block_until_ready(y3)
    assert jnp.allclose(y3, reference_forward(x3, w_conv, b_conv),
                        atol=1e-5, rtol=1e-5), "streamed (ragged) mismatch"

    print("KERNEL_OK")
</pallas_src>

<mosaic_0001>
module attributes {stable_mosaic.version = 11 : i64} {
  func.func @_arm_fused_kernel(%arg0: i32, %arg1: memref<1x128x64xf32, #tpu.memory_space<vmem>>, %arg2: memref<128x128xf32, #tpu.memory_space<vmem>>, %arg3: memref<128x1xf32, #tpu.memory_space<vmem>>, %arg4: memref<1x128x64xf32, #tpu.memory_space<vmem>>) attributes {dimension_semantics = [#tpu.dimension_semantics<parallel>], iteration_bounds = array<i64: 2>, scalar_prefetch = 0 : i64, scratch_operands = 0 : i64, tpu.core_type = #tpu.core_type<tc>, window_params = [{transform_indices = @transform_0, window_bounds = array<i64: 1, 128, 64>}, {pipeline_mode = #tpu.pipeline_mode<synchronous>, transform_indices = @transform_1, window_bounds = array<i64: 128, 128>}, {pipeline_mode = #tpu.pipeline_mode<synchronous>, transform_indices = @transform_2, window_bounds = array<i64: 128, 1>}, {transform_indices = @transform_3, window_bounds = array<i64: 1, 128, 64>}]} {
    %c0 = arith.constant 0 : index
    %c0_0 = arith.constant 0 : index
    %c0_1 = arith.constant 0 : index
    %0 = vector.load %arg1[%c0, %c0_0, %c0_1] : memref<1x128x64xf32, #tpu.memory_space<vmem>>, vector<1x128x64xf32>
    %1 = vector.shape_cast %0 : vector<1x128x64xf32> to vector<128x64xf32>
    %cst = arith.constant dense<0.000000e+00> : vector<128xf32>
    %2 = vector.multi_reduction <add>, %1, %cst [1] : vector<128x64xf32> to vector<128xf32>
    %3 = vector.shape_cast %2 : vector<128xf32> to vector<128x1xf32>
    %cst_2 = arith.constant 1.562500e-02 : f32
    %4 = vector.broadcast %cst_2 : f32 to vector<128x1xf32>
    %5 = arith.mulf %3, %4 : vector<128x1xf32>
    %c0_3 = arith.constant 0 : index
    %c0_4 = arith.constant 0 : index
    %6 = vector.load %arg2[%c0_3, %c0_4] : memref<128x128xf32, #tpu.memory_space<vmem>>, vector<128x128xf32>
    %cst_5 = arith.constant dense<0.000000e+00> : vector<128x1xf32>
    %7 = tpu.matmul %6, %5, %cst_5 {dimension_numbers = #tpu.dot_dimension_numbers<[1], [0], [0], [1], [0, 0, 1, 1], [], []>} : vector<128x128xf32>, vector<128x1xf32>, vector<128x1xf32> -> vector<128x1xf32>
    %c0_6 = arith.constant 0 : index
    %c0_7 = arith.constant 0 : index
    %8 = vector.load %arg3[%c0_6, %c0_7] : memref<128x1xf32, #tpu.memory_space<vmem>>, vector<128x1xf32>
    %9 = arith.addf %7, %8 : vector<128x1xf32>
    %10 = arith.negf %9 : vector<128x1xf32>
    %11 = math.exp %10 : vector<128x1xf32>
    %cst_8 = arith.constant 1.000000e+00 : f32
    %12 = vector.broadcast %cst_8 : f32 to vector<128x1xf32>
    %13 = arith.addf %12, %11 : vector<128x1xf32>
    %14 = arith.divf %12, %13 : vector<128x1xf32>
    %15 = vector.broadcast %14 : vector<128x1xf32> to vector<128x64xf32>
    %16 = arith.mulf %1, %15 : vector<128x64xf32>
    %c0_9 = arith.constant 0 : index
    %c0_10 = arith.constant 0 : index
    %c0_11 = arith.constant 0 : index
    %17 = vector.load %arg4[%c0_9, %c0_10, %c0_11] : memref<1x128x64xf32, #tpu.memory_space<vmem>>, vector<1x128x64xf32>
    %18 = vector.shape_cast %17 : vector<1x128x64xf32> to vector<128x64xf32>
    %19 = vector.shape_cast %16 : vector<128x64xf32> to vector<1x128x64xf32>
    tpu.vector_store %arg4[%c0_9, %c0_10, %c0_11], %19 {strides = array<i32>} : memref<1x128x64xf32, #tpu.memory_space<vmem>>, vector<1x128x64xf32>,
    return
  }
  func.func @transform_0(%arg0: i32) -> (i32, i32, i32) {
    %c0_i32 = arith.constant 0 : i32
    %c0_i32_0 = arith.constant 0 : i32
    %c0_i32_1 = arith.constant 0 : i32
    return %arg0, %c0_i32, %c0_i32_0 : i32, i32, i32
  }
  func.func @transform_1(%arg0: i32) -> (i32, i32) {
    %c0_i32 = arith.constant 0 : i32
    %c0_i32_0 = arith.constant 0 : i32
    %c0_i32_1 = arith.constant 0 : i32
    return %c0_i32, %c0_i32_0 : i32, i32
  }
  func.func @transform_2(%arg0: i32) -> (i32, i32) {
    %c0_i32 = arith.constant 0 : i32
    %c0_i32_0 = arith.constant 0 : i32
    %c0_i32_1 = arith.constant 0 : i32
    return %c0_i32, %c0_i32_0 : i32, i32
  }
  func.func @transform_3(%arg0: i32) -> (i32, i32, i32) {
    %c0_i32 = arith.constant 0 : i32
    %c0_i32_0 = arith.constant 0 : i32
    %c0_i32_1 = arith.constant 0 : i32
    return %arg0, %c0_i32, %c0_i32_0 : i32, i32, i32
  }
}

</mosaic_0001>

<llo_original>
// kernel: tpu_custom_call.1
$region0: #{tpu_custom_call.1}
  #allocation0 [shape = 'u32[]', space=smem, size = 0x4, offset = 0x4, fixed_abs, tag = 'smem constant byte address 0x4 - core index']
  #allocation1 [shape = 'u32[144,128]{1,0:T(1,128)}', space=vmem, size = 0x12000, scoped, tag = 'internal scratch']
  %s0 = inlined_call_operand.vmem [shape: f32[2,128,64], index: 0, kind: input, shape index: {}]
  %s1 = inlined_call_operand.vmem [shape: f32[128,128], index: 1, kind: input, shape index: {}]
  %s2 = inlined_call_operand.vmem [shape: f32[128,1], index: 2, kind: input, shape index: {}]
  %s3 = inlined_call_operand.vmem [shape: f32[2,128,64], index: 3, kind: output, shape index: {}]
  %s4 = sld [smem:[#allocation0]]
  $region45: #{tpu_custom_call.1} parent=0
    _
  %s6 = ssub.s32 1, %s4
  %s7 = scalar_select 0, %s6, %s4
  loop: start=0, step=1, limit=4
  $region2: #{tpu_custom_call.1} parent=0 // loop_pre_header
    _
  $region3: #{tpu_custom_call.1} parent=0 // loop_header
    %s9 = sphi 0, %s13
    %p10 = scmp.ge.s32.totalorder %s9, 4
    %s19 = sphi 0, %s21
    %s22 = sphi 0, %s19
    %s23 = sphi 0, %s22
    %s39 = sphi 0, %s23
    %s43 = sphi 0, %s43
    %s45 = sphi 0, %s43
    %s46 = sphi 0, %s45
    %s60 = sphi 0, %s46
    %s64 = sphi 0, %s64
    %s66 = sphi 0, %s64
    %s67 = sphi 0, %s66
    %s81 = sphi 0, %s67
    %s87 = sphi 0, %s89
    %s90 = sphi 0, %s87
    %s91 = sphi 0, %s90
    %s107 = sphi 0, %s91
  $region4: #{tpu_custom_call.1} parent=0 // loop_header_branch
    %12 = sbr.rel (%p10) target = $region8
  $region5: #{tpu_custom_call.1} parent=0 // loop_body
    %s14 = ssub.s32 %s9, 1
    %s15 = ssub.s32 %s9, 2
    %s16 = sadd.s32 %s9, 1
    %s17 = ssub.s32 %s9, %s16
    %p18 = scmp.eq.s32.totalorder %s17, 0
    %s20 = sadd.s32 %s19, 1
    %s21 = scalar_select %p18, %s19, %s20
    %p24 = pneg %p18
    %p25 = scmp.eq.s32.totalorder %s9, 1
    %p26 = por %p24, %p25
    %p27 = scmp.ne.s32.totalorder %s19, %s22
    %p28 = scmp.eq.s32.totalorder %s9, 0
    %p29 = por %p27, %p28
    %p30 = scmp.ne.s32.totalorder %s19, %s22
    %p31 = scmp.eq.s32.totalorder %s14, 1
    %p32 = por %p30, %p31
    %p33 = scmp.ne.s32.totalorder %s22, %s23
    %p34 = scmp.eq.s32.totalorder %s14, 0
    %p35 = por %p33, %p34
    %p36 = scmp.ne.s32.totalorder %s22, %s23
    %p37 = scmp.eq.s32.totalorder %s15, 1
    %p38 = por %p36, %p37
    %p40 = scmp.ne.s32.totalorder %s23, %s39
    %p41 = scmp.eq.s32.totalorder %s15, 0
    %p42 = por %p40, %p41
    %s44 = sadd.s32 %s43, 1
    %p47 = scmp.eq.s32.totalorder %s9, 1
    %p48 = scmp.ne.s32.totalorder %s43, %s45
    %p49 = scmp.eq.s32.totalorder %s9, 0
    %p50 = por %p48, %p49
    %p51 = scmp.ne.s32.totalorder %s43, %s45
    %p52 = scmp.eq.s32.totalorder %s14, 1
    %p53 = por %p51, %p52
    %p54 = scmp.ne.s32.totalorder %s45, %s46
    %p55 = scmp.eq.s32.totalorder %s14, 0
    %p56 = por %p54, %p55
    %p57 = scmp.ne.s32.totalorder %s45, %s46
    %p58 = scmp.eq.s32.totalorder %s15, 1
    %p59 = por %p57, %p58
    %p61 = scmp.ne.s32.totalorder %s46, %s60
    %p62 = scmp.eq.s32.totalorder %s15, 0
    %p63 = por %p61, %p62
    %s65 = sadd.s32 %s64, 1
    %p68 = scmp.eq.s32.totalorder %s9, 1
    %p69 = scmp.ne.s32.totalorder %s64, %s66
    %p70 = scmp.eq.s32.totalorder %s9, 0
    %p71 = por %p69, %p70
    %p72 = scmp.ne.s32.totalorder %s64, %s66
    %p73 = scmp.eq.s32.totalorder %s14, 1
    %p74 = por %p72, %p73
    %p75 = scmp.ne.s32.totalorder %s66, %s67
    %p76 = scmp.eq.s32.totalorder %s14, 0
    %p77 = por %p75, %p76
    %p78 = scmp.ne.s32.totalorder %s66, %s67
    %p79 = scmp.eq.s32.totalorder %s15, 1
    %p80 = por %p78, %p79
    %p82 = scmp.ne.s32.totalorder %s67, %s81
    %p83 = scmp.eq.s32.totalorder %s15, 0
    %p84 = por %p82, %p83
    %s85 = ssub.s32 %s9, %s16
    %p86 = scmp.eq.s32.totalorder %s85, 0
    %s88 = sadd.s32 %s87, 1
    %s89 = scalar_select %p86, %s87, %s88
    %p92 = pneg %p86
    %p93 = scmp.eq.s32.totalorder %s9, 1
    %p94 = por %p92, %p93
    %p95 = scmp.ne.s32.totalorder %s87, %s90
    %p96 = scmp.eq.s32.totalorder %s9, 0
    %p97 = por %p95, %p96
    %p98 = scmp.ne.s32.totalorder %s87, %s90
    %p99 = scmp.eq.s32.totalorder %s14, 1
    %p100 = por %p98, %p99
    %p101 = scmp.ne.s32.totalorder %s90, %s91
    %p102 = scmp.eq.s32.totalorder %s14, 0
    %p103 = por %p101, %p102
    %p104 = scmp.ne.s32.totalorder %s90, %s91
    %p105 = scmp.eq.s32.totalorder %s15, 1
    %p106 = por %p104, %p105
    %p108 = scmp.ne.s32.totalorder %s91, %s107
    %p109 = scmp.eq.s32.totalorder %s15, 0
    %p110 = por %p108, %p109
    %p111 = scmp.le.s32.totalorder 1, %s9
    %p112 = scmp.lt.s32.totalorder %s9, 3
    %p113 = pnand %p111, %p112
    %p114 = pneg %p113
    // Predicated region
    $region9: #{tpu_custom_call.1} parent=5 // pred_check
      _
    $region10: #{tpu_custom_call.1} parent=5 // pred_check_branch
      %116 = sbr.rel (%p113) target = $region12
    $region11: #{tpu_custom_call.1} parent=5 // pred_region
      %s117 = ssub.s32 %s9, 1
      // Predicated region
      $region13: #{tpu_custom_call.1} parent=11 // pred_check
        %p118 = pneg %p56
      $region14: #{tpu_custom_call.1} parent=11 // pred_check_branch
        %120 = sbr.rel (%p118) target = $region16
      $region15: #{tpu_custom_call.1} parent=11 // pred_region
        _
      $region16: #{tpu_custom_call.1} parent=11 // pred_fallthru
        _
      // Predicated region
      $region17: #{tpu_custom_call.1} parent=11 // pred_check
        %p121 = pneg %p77
      $region18: #{tpu_custom_call.1} parent=11 // pred_check_branch
        %123 = sbr.rel (%p121) target = $region20
      $region19: #{tpu_custom_call.1} parent=11 // pred_region
        _
      $region20: #{tpu_custom_call.1} parent=11 // pred_fallthru
        _
    $region12: #{tpu_custom_call.1} parent=5 // pred_fallthru
      _
    %p124 = scmp.lt.s32.totalorder %s9, 2
    // Predicated region
    $region21: #{tpu_custom_call.1} parent=5 // pred_check
      %p125 = pneg %p124
    $region22: #{tpu_custom_call.1} parent=5 // pred_check_branch
      %127 = sbr.rel (%p125) target = $region24
    $region23: #{tpu_custom_call.1} parent=5 // pred_region
      // Predicated region
      $region25: #{tpu_custom_call.1} parent=23 // pred_check
        %p128 = pneg %p29
      $region26: #{tpu_custom_call.1} parent=23 // pred_check_branch
        %130 = sbr.rel (%p128) target = $region28
      $region27: #{tpu_custom_call.1} parent=23 // pred_region
        %p131 = scmp.lt.s32.totalorder %s9, 1
        %s132 = scalar_select %p131, %s9, 1
        %s133 = smul.addr %s132, 16
        %s134 = smul.addr %s133, 8
        %s135 = scalar_lea.vmem %s0, %s134
      $region28: #{tpu_custom_call.1} parent=23 // pred_fallthru
        _
    $region24: #{tpu_custom_call.1} parent=5 // pred_fallthru
      _
    %p136 = scmp.le.s32.totalorder 1, %s9
    %p137 = scmp.lt.s32.totalorder %s9, 3
    %p138 = pnand %p136, %p137
    %p139 = pneg %p138
    // Predicated region
    $region29: #{tpu_custom_call.1} parent=5 // pred_check
      _
    $region30: #{tpu_custom_call.1} parent=5 // pred_check_branch
      %141 = sbr.rel (%p138) target = $region32
    $region31: #{tpu_custom_call.1} parent=5 // pred_region
      %s142 = ssub.s32 %s9, 1
      %p143 = scmp.lt.s32.totalorder %s14, 1
      %s144 = scalar_select %p143, %s14, 1
      %s145 = smul.addr %s144, 16
      %s146 = smul.addr %s145, 8
      %s147 = scalar_lea.vmem %s0, %s146
      %p148 = pneg %p35
      %p149 = pneg %p32
      %p150 = pneg %p56
      %p151 = pneg %p53
      %p152 = pneg %p77
      %p153 = pneg %p74
      %p154 = pneg %p103
      %p155 = pneg %p100
      %p156 = scmp.lt.s32.totalorder %s14, 1
      %s157 = scalar_select %p156, %s14, 1
      %s158 = smul.addr %s157, 16
      %s159 = smul.addr %s158, 8
      %s160 = scalar_lea.vmem %s3, %s159
      %p161 = scmp.lt.s32.totalorder %s14, 1
      %s162 = scalar_select %p161, %s14, 1
      %s163 = smul.addr %s162, 16
      %s164 = smul.addr %s163, 8
      %s165 = scalar_lea.vmem %s0, %s164
      %p166 = scmp.lt.s32.totalorder %s14, 1
      %s167 = scalar_select %p166, %s14, 1
      %s168 = smul.addr %s167, 16
      %s169 = smul.addr %s168, 8
      %s170 = scalar_lea.vmem %s3, %s169
      %v171 = vld [vmem:[%s165] sm:$0xff]
      %v172 = vld [vmem:[%s165 + $0x8] sm:$0xff]
      %v173 = vld [vmem:[%s165 + $0x10] sm:$0xff]
      %v174 = vld [vmem:[%s165 + $0x18] sm:$0xff]
      %v175 = vld [vmem:[%s165 + $0x20] sm:$0xff]
      %v176 = vld [vmem:[%s165 + $0x28] sm:$0xff]
      %v177 = vld [vmem:[%s165 + $0x30] sm:$0xff]
      %v178 = vld [vmem:[%s165 + $0x38] sm:$0xff]
      %v179 = vld [vmem:[%s165 + $0x40] sm:$0xff]
      %v180 = vld [vmem:[%s165 + $0x48] sm:$0xff]
      %v181 = vld [vmem:[%s165 + $0x50] sm:$0xff]
      %v182 = vld [vmem:[%s165 + $0x58] sm:$0xff]
      %v183 = vld [vmem:[%s165 + $0x60] sm:$0xff]
      %v184 = vld [vmem:[%s165 + $0x68] sm:$0xff]
      %v185 = vld [vmem:[%s165 + $0x70] sm:$0xff]
      %v186 = vld [vmem:[%s165 + $0x78] sm:$0xff]
      %vm187 = vcmask 523264
      %v188 = vsel %vm187, %v171, 0.0
      %189 = vadd.xlane.f32.xlu0 %v188
      %v190 = vpop.xlane.xlu0 %189
      %v191 = vsel %vm187, %v172, 0.0
      %192 = vadd.xlane.f32.xlu0 %v191
      %v193 = vpop.xlane.xlu0 %192
      %v194 = vsel %vm187, %v173, 0.0
      %195 = vadd.xlane.f32.xlu0 %v194
      %v196 = vpop.xlane.xlu0 %195
      %v197 = vsel %vm187, %v174, 0.0
      %198 = vadd.xlane.f32.xlu0 %v197
      %v199 = vpop.xlane.xlu0 %198
      %v200 = vsel %vm187, %v175, 0.0
      %201 = vadd.xlane.f32.xlu0 %v200
      %v202 = vpop.xlane.xlu0 %201
      %v203 = vsel %vm187, %v176, 0.0
      %204 = vadd.xlane.f32.xlu0 %v203
      %v205 = vpop.xlane.xlu0 %204
      %v206 = vsel %vm187, %v177, 0.0
      %207 = vadd.xlane.f32.xlu0 %v206
      %v208 = vpop.xlane.xlu0 %207
      %v209 = vsel %vm187, %v178, 0.0
      %210 = vadd.xlane.f32.xlu0 %v209
      %v211 = vpop.xlane.xlu0 %210
      %v212 = vsel %vm187, %v179, 0.0
      %213 = vadd.xlane.f32.xlu0 %v212
      %v214 = vpop.xlane.xlu0 %213
      %v215 = vsel %vm187, %v180, 0.0
      %216 = vadd.xlane.f32.xlu0 %v215
      %v217 = vpop.xlane.xlu0 %216
      %v218 = vsel %vm187, %v181, 0.0
      %219 = vadd.xlane.f32.xlu0 %v218
      %v220 = vpop.xlane.xlu0 %219
      %v221 = vsel %vm187, %v182, 0.0
      %222 = vadd.xlane.f32.xlu0 %v221
      %v223 = vpop.xlane.xlu0 %222
      %v224 = vsel %vm187, %v183, 0.0
      %225 = vadd.xlane.f32.xlu0 %v224
      %v226 = vpop.xlane.xlu0 %225
      %v227 = vsel %vm187, %v184, 0.0
      %228 = vadd.xlane.f32.xlu0 %v227
      %v229 = vpop.xlane.xlu0 %228
      %v230 = vsel %vm187, %v185, 0.0
      %231 = vadd.xlane.f32.xlu0 %v230
      %v232 = vpop.xlane.xlu0 %231
      %v233 = vsel %vm187, %v186, 0.0
      %234 = vadd.xlane.f32.xlu0 %v233
      %v235 = vpop.xlane.xlu0 %234
      %v236 = vmul.f32 %v190, 0.015625
      %v237 = vmul.f32 %v193, 0.015625
      %v238 = vmul.f32 %v196, 0.015625
      %v239 = vmul.f32 %v199, 0.015625
      %v240 = vmul.f32 %v202, 0.015625
      %v241 = vmul.f32 %v205, 0.015625
      %v242 = vmul.f32 %v208, 0.015625
      %v243 = vmul.f32 %v211, 0.015625
      %v244 = vmul.f32 %v214, 0.015625
      %v245 = vmul.f32 %v217, 0.015625
      %v246 = vmul.f32 %v220, 0.015625
      %v247 = vmul.f32 %v223, 0.015625
      %v248 = vmul.f32 %v226, 0.015625
      %v249 = vmul.f32 %v229, 0.015625
      %v250 = vmul.f32 %v232, 0.015625
      %v251 = vmul.f32 %v235, 0.015625
      %v252 = vld [vmem:[%s1] sm:$0xff]
      %v253 = vld [vmem:[%s1 + $0x8] sm:$0xff]
      %v254 = vld [vmem:[%s1 + $0x10] sm:$0xff]
      %v255 = vld [vmem:[%s1 + $0x18] sm:$0xff]
      %v256 = vld [vmem:[%s1 + $0x20] sm:$0xff]
      %v257 = vld [vmem:[%s1 + $0x28] sm:$0xff]
      %v258 = vld [vmem:[%s1 + $0x30] sm:$0xff]
      %v259 = vld [vmem:[%s1 + $0x38] sm:$0xff]
      %v260 = vld [vmem:[%s1 + $0x40] sm:$0xff]
      %v261 = vld [vmem:[%s1 + $0x48] sm:$0xff]
      %v262 = vld [vmem:[%s1 + $0x50] sm:$0xff]
      %v263 = vld [vmem:[%s1 + $0x58] sm:$0xff]
      %v264 = vld [vmem:[%s1 + $0x60] sm:$0xff]
      %v265 = vld [vmem:[%s1 + $0x68] sm:$0xff]
      %v266 = vld [vmem:[%s1 + $0x70] sm:$0xff]
      %v267 = vld [vmem:[%s1 + $0x78] sm:$0xff]
      %v268 = vld [vmem:[%s2] sm:$0xff]
      %v269 = vld [vmem:[%s2 + $0x8] sm:$0xff]
      %v270 = vld [vmem:[%s2 + $0x10] sm:$0xff]
      %v271 = vld [vmem:[%s2 + $0x18] sm:$0xff]
      %v272 = vld [vmem:[%s2 + $0x20] sm:$0xff]
      %v273 = vld [vmem:[%s2 + $0x28] sm:$0xff]
      %v274 = vld [vmem:[%s2 + $0x30] sm:$0xff]
      %v275 = vld [vmem:[%s2 + $0x38] sm:$0xff]
      %v276 = vld [vmem:[%s2 + $0x40] sm:$0xff]
      %v277 = vld [vmem:[%s2 + $0x48] sm:$0xff]
      %v278 = vld [vmem:[%s2 + $0x50] sm:$0xff]
      %v279 = vld [vmem:[%s2 + $0x58] sm:$0xff]
      %v280 = vld [vmem:[%s2 + $0x60] sm:$0xff]
      %v281 = vld [vmem:[%s2 + $0x68] sm:$0xff]
      %v282 = vld [vmem:[%s2 + $0x70] sm:$0xff]
      %v283 = vld [vmem:[%s2 + $0x78] sm:$0xff]
      %284 = vmatprep.subr.mxu0 0.0
      %285 = vmatpush1.msra.mxu0 %v251
      %286 = vmatprep.subr.mxu0 0.0
      %287 = vmatpush1.msra.mxu0 %v250
      %288 = vmatprep.subr.mxu0 0.0
      %289 = vmatpush1.msra.mxu0 %v249
      %290 = vmatprep.subr.mxu0 0.0
      %291 = vmatpush1.msra.mxu0 %v248
      %292 = vmatprep.subr.mxu0 0.0
      %293 = vmatpush1.msra.mxu0 %v247
      %294 = vmatprep.subr.mxu0 0.0
      %295 = vmatpush1.msra.mxu0 %v246
      %296 = vmatprep.subr.mxu0 0.0
      %297 = vmatpush1.msra.mxu0 %v245
      %298 = vmatprep.subr.mxu0 0.0
      %299 = vmatpush1.msra.mxu0 %v244
      %300 = vmatprep.subr.mxu0 0.0
      %301 = vmatpush1.msra.mxu0 %v243
      %302 = vmatprep.subr.mxu0 0.0
      %303 = vmatpush1.msra.mxu0 %v242
      %304 = vmatprep.subr.mxu0 0.0
      %305 = vmatpush1.msra.mxu0 %v241
      %306 = vmatprep.subr.mxu0 0.0
      %307 = vmatpush1.msra.mxu0 %v240
      %308 = vmatprep.subr.mxu0 0.0
      %309 = vmatpush1.msra.mxu0 %v239
      %310 = vmatprep.subr.mxu0 0.0
      %311 = vmatpush1.msra.mxu0 %v238
      %312 = vmatprep.subr.mxu0 0.0
      %313 = vmatpush1.msra.mxu0 %v237
      %314 = vmatprep.subr.mxu0 0.0
      %315 = vmatpush1.msra.mxu0 %v236
      %316 = vmatprep.subr.mxu0 0.0
      %317 = vmatpush2.msra.mxu0 0.0
      %318 = vmatprep.subr.mxu0 0.0
      %319 = vmatpush2.msra.mxu0 0.0
      %320 = vmatprep.subr.mxu0 0.0
      %321 = vmatpush2.msra.mxu0 0.0
      %322 = vmatprep.subr.mxu0 0.0
      %323 = vmatpush2.msra.mxu0 0.0
      %324 = vmatprep.subr.mxu0 0.0
      %325 = vmatpush2.msra.mxu0 0.0
      %326 = vmatprep.subr.mxu0 0.0
      %327 = vmatpush2.msra.mxu0 0.0
      %328 = vmatprep.subr.mxu0 0.0
      %329 = vmatpush2.msra.mxu0 0.0
      %330 = vmatprep.subr.mxu0 0.0
      %331 = vmatpush2.msra.mxu0 0.0
      %332 = vmatprep.subr.mxu0 0.0
      %333 = vmatpush2.msra.mxu0 0.0
      %334 = vmatprep.subr.mxu0 0.0
      %335 = vmatpush2.msra.mxu0 0.0
      %336 = vmatprep.subr.mxu0 0.0
      %337 = vmatpush2.msra.mxu0 0.0
      %338 = vmatprep.subr.mxu0 0.0
      %339 = vmatpush2.msra.mxu0 0.0
      %340 = vmatprep.subr.mxu0 0.0
      %341 = vmatpush2.msra.mxu0 0.0
      %342 = vmatprep.subr.mxu0 0.0
      %343 = vmatpush2.msra.mxu0 0.0
      %344 = vmatprep.subr.mxu0 0.0
      %345 = vmatpush2.msra.mxu0 0.0
      %346 = vmatprep.subr.mxu0 0.0
      %347 = vmatpush2.msra.mxu0 0.0
      %348 = vmatprep.mubr.f32.mxu0 0.0
      %349 = vmatmul.mubr.f32.gmra.mxu0 %v252
      %v350 = vpop.f32.mrf.mxu0
      %v351 = vadd.f32 %v268, %v350
      %v352 = vpop.f32.mrf.mxu0
      %353 = vmatprep.mubr.f32.mxu0 0.0
      %354 = vmatmul.mubr.f32.gmra.mxu0 %v253
      %v355 = vpop.f32.mrf.mxu0
      %v356 = vadd.f32 %v269, %v355
      %v357 = vpop.f32.mrf.mxu0
      %358 = vmatprep.mubr.f32.mxu0 0.0
      %359 = vmatmul.mubr.f32.gmra.mxu0 %v254
      %v360 = vpop.f32.mrf.mxu0
      %v361 = vadd.f32 %v270, %v360
      %v362 = vpop.f32.mrf.mxu0
      %363 = vmatprep.mubr.f32.mxu0 0.0
      %364 = vmatmul.mubr.f32.gmra.mxu0 %v255
      %v365 = vpop.f32.mrf.mxu0
      %v366 = vadd.f32 %v271, %v365
      %v367 = vpop.f32.mrf.mxu0
      %368 = vmatprep.mubr.f32.mxu0 0.0
      %369 = vmatmul.mubr.f32.gmra.mxu0 %v256
      %v370 = vpop.f32.mrf.mxu0
      %v371 = vadd.f32 %v272, %v370
      %v372 = vpop.f32.mrf.mxu0
      %373 = vmatprep.mubr.f32.mxu0 0.0
      %374 = vmatmul.mubr.f32.gmra.mxu0 %v257
      %v375 = vpop.f32.mrf.mxu0
      %v376 = vadd.f32 %v273, %v375
      %v377 = vpop.f32.mrf.mxu0
      %378 = vmatprep.mubr.f32.mxu0 0.0
      %379 = vmatmul.mubr.f32.gmra.mxu0 %v258
      %v380 = vpop.f32.mrf.mxu0
      %v381 = vadd.f32 %v274, %v380
      %v382 = vpop.f32.mrf.mxu0
      %383 = vmatprep.mubr.f32.mxu0 0.0
      %384 = vmatmul.mubr.f32.gmra.mxu0 %v259
      %v385 = vpop.f32.mrf.mxu0
      %v386 = vadd.f32 %v275, %v385
      %v387 = vpop.f32.mrf.mxu0
      %388 = vmatprep.mubr.f32.mxu0 0.0
      %389 = vmatmul.mubr.f32.gmra.mxu0 %v260
      %v390 = vpop.f32.mrf.mxu0
      %v391 = vadd.f32 %v276, %v390
      %v392 = vpop.f32.mrf.mxu0
      %393 = vmatprep.mubr.f32.mxu0 0.0
      %394 = vmatmul.mubr.f32.gmra.mxu0 %v261
      %v395 = vpop.f32.mrf.mxu0
      %v396 = vadd.f32 %v277, %v395
      %v397 = vpop.f32.mrf.mxu0
      %398 = vmatprep.mubr.f32.mxu0 0.0
      %399 = vmatmul.mubr.f32.gmra.mxu0 %v262
      %v400 = vpop.f32.mrf.mxu0
      %v401 = vadd.f32 %v278, %v400
      %v402 = vpop.f32.mrf.mxu0
      %403 = vmatprep.mubr.f32.mxu0 0.0
      %404 = vmatmul.mubr.f32.gmra.mxu0 %v263
      %v405 = vpop.f32.mrf.mxu0
      %v406 = vadd.f32 %v279, %v405
      %v407 = vpop.f32.mrf.mxu0
      %408 = vmatprep.mubr.f32.mxu0 0.0
      %409 = vmatmul.mubr.f32.gmra.mxu0 %v264
      %v410 = vpop.f32.mrf.mxu0
      %v411 = vadd.f32 %v280, %v410
      %v412 = vpop.f32.mrf.mxu0
      %413 = vmatprep.mubr.f32.mxu0 0.0
      %414 = vmatmul.mubr.f32.gmra.mxu0 %v265
      %v415 = vpop.f32.mrf.mxu0
      %v416 = vadd.f32 %v281, %v415
      %v417 = vpop.f32.mrf.mxu0
      %418 = vmatprep.mubr.f32.mxu0 0.0
      %419 = vmatmul.mubr.f32.gmra.mxu0 %v266
      %v420 = vpop.f32.mrf.mxu0
      %v421 = vadd.f32 %v282, %v420
      %v422 = vpop.f32.mrf.mxu0
      %423 = vmatprep.mubr.f32.mxu0 0.0
      %424 = vmatmul.mubr.f32.gmra.mxu0 %v267
      %v425 = vpop.f32.mrf.mxu0
      %v426 = vadd.f32 %v283, %v425
      %v427 = vpop.f32.mrf.mxu0
      %428 = vdwg.mxu0
      %v429 = vxor.u32 %v351, 2147483648
      %v430 = vxor.u32 %v356, 2147483648
      %v431 = vxor.u32 %v361, 2147483648
      %v432 = vxor.u32 %v366, 2147483648
      %v433 = vxor.u32 %v371, 2147483648
      %v434 = vxor.u32 %v376, 2147483648
      %v435 = vxor.u32 %v381, 2147483648
      %v436 = vxor.u32 %v386, 2147483648
      %v437 = vxor.u32 %v391, 2147483648
      %v438 = vxor.u32 %v396, 2147483648
      %v439 = vxor.u32 %v401, 2147483648
      %v440 = vxor.u32 %v406, 2147483648
      %v441 = vxor.u32 %v411, 2147483648
      %v442 = vxor.u32 %v416, 2147483648
      %v443 = vxor.u32 %v421, 2147483648
      %v444 = vxor.u32 %v426, 2147483648
      %v445 = vmul.f32 %v429, 1.442695
      %v446 = vpow.pop %v445
      %v447 = vmul.f32 %v430, 1.442695
      %v448 = vpow.pop %v447
      %v449 = vmul.f32 %v431, 1.442695
      %v450 = vpow.pop %v449
      %v451 = vmul.f32 %v432, 1.442695
      %v452 = vpow.pop %v451
      %v453 = vmul.f32 %v433, 1.442695
      %v454 = vpow.pop %v453
      %v455 = vmul.f32 %v434, 1.442695
      %v456 = vpow.pop %v455
      %v457 = vmul.f32 %v435, 1.442695
      %v458 = vpow.pop %v457
      %v459 = vmul.f32 %v436, 1.442695
      %v460 = vpow.pop %v459
      %v461 = vmul.f32 %v437, 1.442695
      %v462 = vpow.pop %v461
      %v463 = vmul.f32 %v438, 1.442695
      %v464 = vpow.pop %v463
      %v465 = vmul.f32 %v439, 1.442695
      %v466 = vpow.pop %v465
      %v467 = vmul.f32 %v440, 1.442695
      %v468 = vpow.pop %v467
      %v469 = vmul.f32 %v441, 1.442695
      %v470 = vpow.pop %v469
      %v471 = vmul.f32 %v442, 1.442695
      %v472 = vpow.pop %v471
      %v473 = vmul.f32 %v443, 1.442695
      %v474 = vpow.pop %v473
      %v475 = vmul.f32 %v444, 1.442695
      %v476 = vpow.pop %v475
      %v477 = vadd.f32 %v446, 1.0
      %v478 = vadd.f32 %v448, 1.0
      %v479 = vadd.f32 %v450, 1.0
      %v480 = vadd.f32 %v452, 1.0
      %v481 = vadd.f32 %v454, 1.0
      %v482 = vadd.f32 %v456, 1.0
      %v483 = vadd.f32 %v458, 1.0
      %v484 = vadd.f32 %v460, 1.0
      %v485 = vadd.f32 %v462, 1.0
      %v486 = vadd.f32 %v464, 1.0
      %v487 = vadd.f32 %v466, 1.0
      %v488 = vadd.f32 %v468, 1.0
      %v489 = vadd.f32 %v470, 1.0
      %v490 = vadd.f32 %v472, 1.0
      %v491 = vadd.f32 %v474, 1.0
      %v492 = vadd.f32 %v476, 1.0
      %v493 = vrcp.pop %v477
      %v494 = vmul.f32 1.0, %v493
      %v495 = vrcp.pop %v478
      %v496 = vmul.f32 1.0, %v495
      %v497 = vrcp.pop %v479
      %v498 = vmul.f32 1.0, %v497
      %v499 = vrcp.pop %v480
      %v500 = vmul.f32 1.0, %v499
      %v501 = vrcp.pop %v481
      %v502 = vmul.f32 1.0, %v501
      %v503 = vrcp.pop %v482
      %v504 = vmul.f32 1.0, %v503
      %v505 = vrcp.pop %v483
      %v506 = vmul.f32 1.0, %v505
      %v507 = vrcp.pop %v484
      %v508 = vmul.f32 1.0, %v507
      %v509 = vrcp.pop %v485
      %v510 = vmul.f32 1.0, %v509
      %v511 = vrcp.pop %v486
      %v512 = vmul.f32 1.0, %v511
      %v513 = vrcp.pop %v487
      %v514 = vmul.f32 1.0, %v513
      %v515 = vrcp.pop %v488
      %v516 = vmul.f32 1.0, %v515
      %v517 = vrcp.pop %v489
      %v518 = vmul.f32 1.0, %v517
      %v519 = vrcp.pop %v490
      %v520 = vmul.f32 1.0, %v519
      %v521 = vrcp.pop %v491
      %v522 = vmul.f32 1.0, %v521
      %v523 = vrcp.pop %v492
      %v524 = vmul.f32 1.0, %v523
      %526 = vset.pattern.permute.xlu0 0
      %527 = vperm.xlu0 %526, %v494
      %v528 = vpop.permute.xlu0 %527
      %531 = vset.pattern.permute.xlu0 0
      %532 = vperm.xlu0 %531, %v496
      %v533 = vpop.permute.xlu0 %532
      %536 = vset.pattern.permute.xlu0 0
      %537 = vperm.xlu0 %536, %v498
      %v538 = vpop.permute.xlu0 %537
      %541 = vset.pattern.permute.xlu0 0
      %542 = vperm.xlu0 %541, %v500
      %v543 = vpop.permute.xlu0 %542
      %546 = vset.pattern.permute.xlu0 0
      %547 = vperm.xlu0 %546, %v502
      %v548 = vpop.permute.xlu0 %547
      %551 = vset.pattern.permute.xlu0 0
      %552 = vperm.xlu0 %551, %v504
      %v553 = vpop.permute.xlu0 %552
      %556 = vset.pattern.permute.xlu0 0
      %557 = vperm.xlu0 %556, %v506
      %v558 = vpop.permute.xlu0 %557
      %561 = vset.pattern.permute.xlu0 0
      %562 = vperm.xlu0 %561, %v508
      %v563 = vpop.permute.xlu0 %562
      %566 = vset.pattern.permute.xlu0 0
      %567 = vperm.xlu0 %566, %v510
      %v568 = vpop.permute.xlu0 %567
      %571 = vset.pattern.permute.xlu0 0
      %572 = vperm.xlu0 %571, %v512
      %v573 = vpop.permute.xlu0 %572
      %576 = vset.pattern.permute.xlu0 0
      %577 = vperm.xlu0 %576, %v514
      %v578 = vpop.permute.xlu0 %577
      %581 = vset.pattern.permute.xlu0 0
      %582 = vperm.xlu0 %581, %v516
      %v583 = vpop.permute.xlu0 %582
      %586 = vset.pattern.permute.xlu0 0
      %587 = vperm.xlu0 %586, %v518
      %v588 = vpop.permute.xlu0 %587
      %591 = vset.pattern.permute.xlu0 0
      %592 = vperm.xlu0 %591, %v520
      %v593 = vpop.permute.xlu0 %592
      %596 = vset.pattern.permute.xlu0 0
      %597 = vperm.xlu0 %596, %v522
      %v598 = vpop.permute.xlu0 %597
      %601 = vset.pattern.permute.xlu0 0
      %602 = vperm.xlu0 %601, %v524
      %v603 = vpop.permute.xlu0 %602
      %v605 = vmul.f32 %v171, %v528
      %v606 = vmul.f32 %v172, %v533
      %v607 = vmul.f32 %v173, %v538
      %v608 = vmul.f32 %v174, %v543
      %v609 = vmul.f32 %v175, %v548
      %v610 = vmul.f32 %v176, %v553
      %v611 = vmul.f32 %v177, %v558
      %v612 = vmul.f32 %v178, %v563
      %v613 = vmul.f32 %v179, %v568
      %v614 = vmul.f32 %v180, %v573
      %v615 = vmul.f32 %v181, %v578
      %v616 = vmul.f32 %v182, %v583
      %v617 = vmul.f32 %v183, %v588
      %v618 = vmul.f32 %v184, %v593
      %v619 = vmul.f32 %v185, %v598
      %v620 = vmul.f32 %v186, %v603
      %621 = vst.msk [vmem:[%s170] sm:$0xff] %vm187, %v605
      %622 = vst.msk [vmem:[%s170 + $0x8] sm:$0xff] %vm187, %v606
      %623 = vst.msk [vmem:[%s170 + $0x10] sm:$0xff] %vm187, %v607
      %624 = vst.msk [vmem:[%s170 + $0x18] sm:$0xff] %vm187, %v608
      %625 = vst.msk [vmem:[%s170 + $0x20] sm:$0xff] %vm187, %v609
      %626 = vst.msk [vmem:[%s170 + $0x28] sm:$0xff] %vm187, %v610
      %627 = vst.msk [vmem:[%s170 + $0x30] sm:$0xff] %vm187, %v611
      %628 = vst.msk [vmem:[%s170 + $0x38] sm:$0xff] %vm187, %v612
      %629 = vst.msk [vmem:[%s170 + $0x40] sm:$0xff] %vm187, %v613
      %630 = vst.msk [vmem:[%s170 + $0x48] sm:$0xff] %vm187, %v614
      %631 = vst.msk [vmem:[%s170 + $0x50] sm:$0xff] %vm187, %v615
      %632 = vst.msk [vmem:[%s170 + $0x58] sm:$0xff] %vm187, %v616
      %633 = vst.msk [vmem:[%s170 + $0x60] sm:$0xff] %vm187, %v617
      %634 = vst.msk [vmem:[%s170 + $0x68] sm:$0xff] %vm187, %v618
      %635 = vst.msk [vmem:[%s170 + $0x70] sm:$0xff] %vm187, %v619
      %636 = vst.msk [vmem:[%s170 + $0x78] sm:$0xff] %vm187, %v620
      %p637 = scmp.lt.s32.totalorder %s14, 1
      %s638 = scalar_select %p637, %s14, 1
      %s639 = smul.addr %s638, 16
      %s640 = smul.addr %s639, 8
      %s641 = scalar_lea.vmem %s3, %s640
      // Predicated region
      $region33: #{tpu_custom_call.1} parent=31 // pred_check
        %p642 = pneg %p100
      $region34: #{tpu_custom_call.1} parent=31 // pred_check_branch
        %644 = sbr.rel (%p642) target = $region36
      $region35: #{tpu_custom_call.1} parent=31 // pred_region
        _
      $region36: #{tpu_custom_call.1} parent=31 // pred_fallthru
        _
    $region32: #{tpu_custom_call.1} parent=5 // pred_fallthru
      _
    %p645 = scmp.le.s32.totalorder 2, %s9
    // Predicated region
    $region37: #{tpu_custom_call.1} parent=5 // pred_check
      %p646 = pneg %p645
    $region38: #{tpu_custom_call.1} parent=5 // pred_check_branch
      %648 = sbr.rel (%p646) target = $region40
    $region39: #{tpu_custom_call.1} parent=5 // pred_region
      %s649 = ssub.s32 %s9, 2
      // Predicated region
      $region41: #{tpu_custom_call.1} parent=39 // pred_check
        %p650 = pneg %p106
      $region42: #{tpu_custom_call.1} parent=39 // pred_check_branch
        %652 = sbr.rel (%p650) target = $region44
      $region43: #{tpu_custom_call.1} parent=39 // pred_region
        %p653 = scmp.lt.s32.totalorder %s15, 1
        %s654 = scalar_select %p653, %s15, 1
        %s655 = smul.addr %s654, 16
        %s656 = smul.addr %s655, 8
        %s657 = scalar_lea.vmem %s3, %s656
      $region44: #{tpu_custom_call.1} parent=39 // pred_fallthru
        _
    $region40: #{tpu_custom_call.1} parent=5 // pred_fallthru
      _
  $region6: #{tpu_custom_call.1} parent=0 // loop_footer
    %s13 = sadd.s32 1, %s9
  $region7: #{tpu_custom_call.1} parent=0 // loop_footer_branch
    %8 = sbr.rel target = $region3
  $region8: #{tpu_custom_call.1} parent=0 // loop_exit
    _

</llo_original>
